<compile_context>
chip_gen: v7x
topology: tpu7x:2x2x1
jax: 0.10.0
libtpu: 0.0.40
codegen_flags: <defaults>
</compile_context>

<pallas_src>
import functools

import jax
import jax.numpy as jnp
from jax.experimental import pallas as pl
from jax.experimental.pallas import tpu as pltpu


def _l1_partial_kernel(pred_ref, gt_ref, mask_ref, loss_out, msum_out, *,
                       tr, lane, n_rows, rblocks_per_core, acc_rows,
                       needs_mask):
    c = pl.program_id(0)   # core-split axis ("parallel")
    n = pl.program_id(1)   # batch axis ("arbitrary")
    r = pl.program_id(2)   # row-block axis within this core ("arbitrary")

    # Zero this core's resident output blocks at the start of its sweep.
    @pl.when(jnp.logical_and(n == 0, r == 0))
    def _():
        loss_out[...] = jnp.zeros_like(loss_out)
        msum_out[...] = jnp.zeros_like(msum_out)

    # In-kernel casts (inputs may be f32 / bf16 / int8 / bool).
    p = pred_ref[...].astype(jnp.float32)
    g = gt_ref[...].astype(jnp.float32)
    m = mask_ref[...].astype(jnp.float32)
    contrib = jnp.abs(p - g) * m

    if needs_mask:
        # Tail rows (R % tr != 0) and overflow row-blocks (rblocks % splits
        # != 0) are zeroed here; the DMA'd padding may be garbage, so use a
        # select (jnp.where), never a multiply.
        rb = c * rblocks_per_core + r
        row = jax.lax.broadcasted_iota(jnp.int32, (tr, 1), 0) + rb * tr
        valid = row < n_rows
        contrib = jnp.where(valid, contrib, 0.0)
        m = jnp.where(valid, m, 0.0)

    if tr != acc_rows:
        # Cheap sublane partial reduce: (tr, lane) -> (acc_rows, lane).
        contrib = contrib.reshape(tr // acc_rows, acc_rows, lane).sum(axis=0)
        m = m.reshape(tr // acc_rows, acc_rows, lane).sum(axis=0)

    loss_out[...] += contrib
    msum_out[...] += m


def _pick_lane(hw):
    """Largest multiple-of-128 divisor of hw (<=2048); else full plane width."""
    for lane in (2048, 1024, 512, 256, 128):
        if hw % lane == 0:
            return lane
    return hw  # full array dim on the lane axis is always a legal block dim


def _sublane_multiple(*dtypes):
    """Min legal sublane tile across input dtypes: 8 f32, 16 bf16, 32 int8."""
    m = 8
    for dt in dtypes:
        m = max(m, 8 * max(1, 4 // max(1, dt.itemsize)))
    return m


def _device_tuning():
    """(block byte target per input, scoped VMEM limit)."""
    try:
        kind = jax.devices()[0].device_kind.lower()
    except Exception:
        kind = ""
    if "v7" in kind:          # v7x: 3.2 TB/s -> bigger blocks pay off
        return 4 << 20, 48 * 1024 * 1024
    return 2 << 20, 32 * 1024 * 1024


def _masked_l1_partials(pred, gt, mask, *, block_target_bytes=None):
    """pred: (N, C, H, W); gt/mask: (N, H, W).

    Returns two small f32 arrays of lane-dense per-core partial sums for
    (|pred[:,0] - gt| * mask) and mask; sum them in the caller.
    """
    N, C, H, W = pred.shape
    HW = H * W

    lane = _pick_lane(HW)
    R = HW // lane

    target_bytes, vmem_limit = _device_tuning()
    if block_target_bytes is not None:
        target_bytes = block_target_bytes

    mult = _sublane_multiple(pred.dtype, gt.dtype, mask.dtype)

    if R >= mult:
        # Tiled path: tr multiple of `mult`, near the byte target, <= R.
        tr = max(mult, (target_bytes // (lane * 4)) // mult * mult)
        tr = min(tr, (R // mult) * mult)
        acc_rows = 8
    else:
        # Small / awkward shapes: one full-dim block (always legal).
        tr = R
        acc_rows = R

    rblocks = pl.cdiv(R, tr)
    num_splits = 2 if (rblocks >= 2 and acc_rows == 8) else 1
    rpc = pl.cdiv(rblocks, num_splits)          # row blocks per core
    needs_mask = (R % tr != 0) or (rblocks % num_splits != 0)
    last_rb = rblocks - 1

    # Free (contiguous) reshapes only — no pad, no slice, no cast.
    pred4 = pred.reshape(N, C, R, lane)
    gt3 = gt.reshape(N, R, lane)
    mask3 = mask.reshape(N, R, lane)

    def row_block(c, r):
        # Clamp overflow blocks into range; the kernel masks them to zero.
        return jnp.minimum(c * rpc + r, last_rb)

    # Channel pinned to 0 via the index_map (avoids materializing pred[:, 0]).
    pred_spec = pl.BlockSpec((None, None, tr, lane),
                             lambda c, n, r: (n, 0, row_block(c, r), 0))
    gm_spec = pl.BlockSpec((None, tr, lane),
                           lambda c, n, r: (n, row_block(c, r), 0))
    out_spec = pl.BlockSpec((acc_rows, lane), lambda c, n, r: (c, 0))

    kernel = functools.partial(
        _l1_partial_kernel, tr=tr, lane=lane, n_rows=R,
        rblocks_per_core=rpc, acc_rows=acc_rows, needs_mask=needs_mask)

    n_elem = N * HW
    out_bytes = 2 * num_splits * acc_rows * lane * 4
    cost = pl.CostEstimate(
        flops=5 * n_elem,
        transcendentals=0,
        bytes_accessed=n_elem * (pred.dtype.itemsize + gt.dtype.itemsize
                                 + mask.dtype.itemsize) + out_bytes,
    )

    loss_part, msum_part = pl.pallas_call(
        kernel,
        out_shape=(
            jax.ShapeDtypeStruct((num_splits * acc_rows, lane), jnp.float32),
            jax.ShapeDtypeStruct((num_splits * acc_rows, lane), jnp.float32),
        ),
        grid_spec=pltpu.PrefetchScalarGridSpec(
            num_scalar_prefetch=0,
            grid=(num_splits, N, rpc),
            in_specs=[pred_spec, gm_spec, gm_spec],
            out_specs=[out_spec, out_spec],
            scratch_shapes=[],
        ),
        compiler_params=pltpu.CompilerParams(
            dimension_semantics=("parallel", "arbitrary", "arbitrary"),
            vmem_limit_bytes=vmem_limit,
        ),
        cost_estimate=cost,
    )(pred4, gt3, mask3)
    return loss_part, msum_part


def l1_loss(pred, gt, mask, *, block_target_bytes=None):
    """Matches L1Loss.forward:
       mask.sum() == 0 -> 0.0
       else            -> (|pred[:, 0] - gt| * mask).sum() / mask.sum() * 10.0
    """
    loss_part, msum_part = _masked_l1_partials(
        pred, gt, mask, block_target_bytes=block_target_bytes)
    loss_sum = jnp.sum(loss_part)
    mask_sum = jnp.sum(msum_part)
    safe_den = jnp.where(mask_sum == 0.0, jnp.float32(1.0), mask_sum)
    loss = loss_sum / safe_den * 10.0
    return jnp.where(mask_sum == 0.0, jnp.float32(0.0), loss)


if __name__ == "__main__":
    key = jax.random.PRNGKey(0)
    k1, k2, k3 = jax.random.split(key, 3)

    def ref_loss(p, g, m):
        ms = m.sum()
        num = (jnp.abs(p[:, 0] - g) * m).sum()
        return jnp.where(ms == 0.0, jnp.float32(0.0),
                         num / jnp.where(ms == 0.0, 1.0, ms) * 10.0)

    # Small shapes consistent with the module: pred (N,C,H,W), gt/mask (N,H,W).
    N, C, H, W = 2, 4, 16, 16
    pred = jax.random.normal(k1, (N, C, H, W), dtype=jnp.float32)
    gt = jax.random.normal(k2, (N, H, W), dtype=jnp.float32)
    mask = (jax.random.uniform(k3, (N, H, W)) > 0.5).astype(jnp.float32)

    out = jax.block_until_ready(l1_loss(pred, gt, mask))
    ref = ref_loss(pred, gt, mask)
    assert jnp.allclose(out, ref, rtol=1e-5, atol=1e-5), (out, ref)

    # Zero-mask edge case (PyTorch early-return branch).
    zero_mask = jnp.zeros((N, H, W), dtype=jnp.float32)
    out0 = jax.block_until_ready(l1_loss(pred, gt, zero_mask))
    assert jnp.allclose(out0, 0.0), out0

    # Exercise the tiled path: tail-row masking, overflow-block clamp and the
    # 2-way "parallel" split (forced small blocks so it triggers at modest size).
    N2, C2, H2, W2 = 1, 2, 136, 256      # H*W = 34816 = 17 * 2048
    p2 = jax.random.normal(k1, (N2, C2, H2, W2), dtype=jnp.float32)
    g2 = jax.random.normal(k2, (N2, H2, W2), dtype=jnp.float32)
    m2 = (jax.random.uniform(k3, (N2, H2, W2)) > 0.3).astype(jnp.float32)
    out2 = jax.block_until_ready(
        l1_loss(p2, g2, m2, block_target_bytes=8 * 2048 * 4))    # tr = 8
    assert jnp.allclose(out2, ref_loss(p2, g2, m2), rtol=1e-4, atol=1e-4), out2

    # Same shapes, larger forced block -> exercises the sublane partial reduce
    # ((tr//8, 8, lane).sum(0)) path with a partial tail block.
    out3 = jax.block_until_ready(
        l1_loss(p2, g2, m2, block_target_bytes=16 * 2048 * 4))   # tr = 16
    assert jnp.allclose(out3, ref_loss(p2, g2, m2), rtol=1e-4, atol=1e-4), out3

    print("KERNEL_OK")
</pallas_src>

<mosaic_0001>
module attributes {stable_mosaic.version = 11 : i64} {
  func.func @_l1_partial_kernel(%arg0: i32, %arg1: i32, %arg2: i32, %arg3: memref<1x1x1x256xf32, #tpu.memory_space<vmem>>, %arg4: memref<1x1x256xf32, #tpu.memory_space<vmem>>, %arg5: memref<1x1x256xf32, #tpu.memory_space<vmem>>, %arg6: memref<1x256xf32, #tpu.memory_space<vmem>>, %arg7: memref<1x256xf32, #tpu.memory_space<vmem>>) attributes {dimension_semantics = [#tpu.dimension_semantics<parallel>, #tpu.dimension_semantics<arbitrary>, #tpu.dimension_semantics<arbitrary>], iteration_bounds = array<i64: 1, 2, 1>, scalar_prefetch = 0 : i64, scratch_operands = 0 : i64, tpu.core_type = #tpu.core_type<tc>, window_params = [{transform_indices = @transform_0, window_bounds = array<i64: 1, 1, 1, 256>}, {transform_indices = @transform_1, window_bounds = array<i64: 1, 1, 256>}, {transform_indices = @transform_2, window_bounds = array<i64: 1, 1, 256>}, {transform_indices = @transform_3, window_bounds = array<i64: 1, 256>}, {transform_indices = @transform_4, window_bounds = array<i64: 1, 256>}]} {
    %c0_i32 = arith.constant 0 : i32
    %0 = arith.cmpi eq, %arg1, %c0_i32 : i32
    %c0_i32_0 = arith.constant 0 : i32
    %1 = arith.cmpi eq, %arg2, %c0_i32_0 : i32
    %2 = arith.andi %0, %1 : i1
    %3 = arith.extui %2 : i1 to i32
    %c0_i32_1 = arith.constant 0 : i32
    %4 = arith.cmpi ne, %3, %c0_i32_1 : i32
    scf.if %4 {
      %cst = arith.constant 0.000000e+00 : f32
      %20 = vector.broadcast %cst : f32 to vector<1x256xf32>
      %c0_19 = arith.constant 0 : index
      %c0_20 = arith.constant 0 : index
      %21 = vector.load %arg6[%c0_19, %c0_20] : memref<1x256xf32, #tpu.memory_space<vmem>>, vector<1x256xf32>
      tpu.vector_store %arg6[%c0_19, %c0_20], %20 {strides = array<i32>} : memref<1x256xf32, #tpu.memory_space<vmem>>, vector<1x256xf32>,
      %cst_21 = arith.constant 0.000000e+00 : f32
      %22 = vector.broadcast %cst_21 : f32 to vector<1x256xf32>
      %c0_22 = arith.constant 0 : index
      %c0_23 = arith.constant 0 : index
      %23 = vector.load %arg7[%c0_22, %c0_23] : memref<1x256xf32, #tpu.memory_space<vmem>>, vector<1x256xf32>
      tpu.vector_store %arg7[%c0_22, %c0_23], %22 {strides = array<i32>} : memref<1x256xf32, #tpu.memory_space<vmem>>, vector<1x256xf32>,
    } else {
    }
    %c0 = arith.constant 0 : index
    %c0_2 = arith.constant 0 : index
    %c0_3 = arith.constant 0 : index
    %c0_4 = arith.constant 0 : index
    %5 = vector.load %arg3[%c0, %c0_2, %c0_3, %c0_4] : memref<1x1x1x256xf32, #tpu.memory_space<vmem>>, vector<1x1x1x256xf32>
    %6 = vector.shape_cast %5 : vector<1x1x1x256xf32> to vector<1x256xf32>
    %c0_5 = arith.constant 0 : index
    %c0_6 = arith.constant 0 : index
    %c0_7 = arith.constant 0 : index
    %7 = vector.load %arg4[%c0_5, %c0_6, %c0_7] : memref<1x1x256xf32, #tpu.memory_space<vmem>>, vector<1x1x256xf32>
    %8 = vector.shape_cast %7 : vector<1x1x256xf32> to vector<1x256xf32>
    %c0_8 = arith.constant 0 : index
    %c0_9 = arith.constant 0 : index
    %c0_10 = arith.constant 0 : index
    %9 = vector.load %arg5[%c0_8, %c0_9, %c0_10] : memref<1x1x256xf32, #tpu.memory_space<vmem>>, vector<1x1x256xf32>
    %10 = vector.shape_cast %9 : vector<1x1x256xf32> to vector<1x256xf32>
    %11 = arith.subf %6, %8 : vector<1x256xf32>
    %12 = math.absf %11 : vector<1x256xf32>
    %13 = arith.mulf %12, %10 : vector<1x256xf32>
    %c0_11 = arith.constant 0 : index
    %c0_12 = arith.constant 0 : index
    %14 = vector.load %arg6[%c0_11, %c0_12] : memref<1x256xf32, #tpu.memory_space<vmem>>, vector<1x256xf32>
    %15 = arith.addf %14, %13 : vector<1x256xf32>
    %c0_13 = arith.constant 0 : index
    %c0_14 = arith.constant 0 : index
    %16 = vector.load %arg6[%c0_13, %c0_14] : memref<1x256xf32, #tpu.memory_space<vmem>>, vector<1x256xf32>
    tpu.vector_store %arg6[%c0_13, %c0_14], %15 {strides = array<i32>} : memref<1x256xf32, #tpu.memory_space<vmem>>, vector<1x256xf32>,
    %c0_15 = arith.constant 0 : index
    %c0_16 = arith.constant 0 : index
    %17 = vector.load %arg7[%c0_15, %c0_16] : memref<1x256xf32, #tpu.memory_space<vmem>>, vector<1x256xf32>
    %18 = arith.addf %17, %10 : vector<1x256xf32>
    %c0_17 = arith.constant 0 : index
    %c0_18 = arith.constant 0 : index
    %19 = vector.load %arg7[%c0_17, %c0_18] : memref<1x256xf32, #tpu.memory_space<vmem>>, vector<1x256xf32>
    tpu.vector_store %arg7[%c0_17, %c0_18], %18 {strides = array<i32>} : memref<1x256xf32, #tpu.memory_space<vmem>>, vector<1x256xf32>,
    return
  }
  func.func @transform_0(%arg0: i32, %arg1: i32, %arg2: i32) -> (i32, i32, i32, i32) {
    %c1_i32 = arith.constant 1 : i32
    %0 = arith.muli %arg0, %c1_i32 : i32
    %1 = arith.addi %0, %arg2 : i32
    %c0_i32 = arith.constant 0 : i32
    %2 = arith.minsi %1, %c0_i32 : i32
    %c0_i32_0 = arith.constant 0 : i32
    %c0_i32_1 = arith.constant 0 : i32
    %c0_i32_2 = arith.constant 0 : i32
    return %arg1, %c0_i32_0, %2, %c0_i32_1 : i32, i32, i32, i32
  }
  func.func @transform_1(%arg0: i32, %arg1: i32, %arg2: i32) -> (i32, i32, i32) {
    %c1_i32 = arith.constant 1 : i32
    %0 = arith.muli %arg0, %c1_i32 : i32
    %1 = arith.addi %0, %arg2 : i32
    %c0_i32 = arith.constant 0 : i32
    %2 = arith.minsi %1, %c0_i32 : i32
    %c0_i32_0 = arith.constant 0 : i32
    %c0_i32_1 = arith.constant 0 : i32
    return %arg1, %2, %c0_i32_0 : i32, i32, i32
  }
  func.func @transform_2(%arg0: i32, %arg1: i32, %arg2: i32) -> (i32, i32, i32) {
    %c1_i32 = arith.constant 1 : i32
    %0 = arith.muli %arg0, %c1_i32 : i32
    %1 = arith.addi %0, %arg2 : i32
    %c0_i32 = arith.constant 0 : i32
    %2 = arith.minsi %1, %c0_i32 : i32
    %c0_i32_0 = arith.constant 0 : i32
    %c0_i32_1 = arith.constant 0 : i32
    return %arg1, %2, %c0_i32_0 : i32, i32, i32
  }
  func.func @transform_3(%arg0: i32, %arg1: i32, %arg2: i32) -> (i32, i32) {
    %c0_i32 = arith.constant 0 : i32
    %c0_i32_0 = arith.constant 0 : i32
    return %arg0, %c0_i32 : i32, i32
  }
  func.func @transform_4(%arg0: i32, %arg1: i32, %arg2: i32) -> (i32, i32) {
    %c0_i32 = arith.constant 0 : i32
    %c0_i32_0 = arith.constant 0 : i32
    return %arg0, %c0_i32 : i32, i32
  }
}

</mosaic_0001>

<llo_original>
// kernel: tpu_custom_call.1
$region0: #{tpu_custom_call.1}
  #allocation0 [shape = 'u32[]', space=smem, size = 0x4, offset = 0x4, fixed_abs, tag = 'smem constant byte address 0x4 - core index']
  #allocation1 [shape = 'u32[144,128]{1,0:T(1,128)}', space=vmem, size = 0x12000, scoped, tag = 'internal scratch']
  %s0 = inlined_call_operand.hbm [shape: f32[2,4,1,256], index: 0, kind: input, shape index: {}]
  %s1 = inlined_call_operand.hbm [shape: f32[2,1,256], index: 1, kind: input, shape index: {}]
  %s2 = inlined_call_operand.vmem [shape: f32[2,1,256], index: 2, kind: input, shape index: {}]
  %s3 = inlined_call_operand.hbm [shape: f32[1,256], index: 3, kind: output, shape index: {0}]
  %s4 = inlined_call_operand.hbm [shape: f32[1,256], index: 4, kind: output, shape index: {1}]
  %5 = xla_tuple %s3, %s4
  %s6 = sld [smem:[#allocation0]]
  $region65: #{tpu_custom_call.1} parent=0
    _
  %s8 = ssub.s32 1, %s6
  %s9 = scalar_select 0, %s8, %s6
  $region1: #{tpu_custom_call.1} parent=0
    #allocation2 [shape = 'u8[2048]{0}', space=vmem, size = 0x800, scoped, tag = 'input window, operand 0']
    #allocation3 [shape = 's32[2]{0}', space=sflag, size = 0x8, scoped, tag = 'scoped memory for tpu_custom_call.1']
    #allocation4 [shape = 's32[2]{0}', space=sflag, size = 0x8, scoped, tag = 'scoped memory for tpu_custom_call.1']
    #allocation5 [shape = 'u8[2048]{0}', space=vmem, size = 0x800, scoped, tag = 'input window, operand 1']
    #allocation6 [shape = 's32[2]{0}', space=sflag, size = 0x8, scoped, tag = 'scoped memory for tpu_custom_call.1']
    #allocation7 [shape = 'u8[1024]{0}', space=vmem, size = 0x400, scoped, tag = 'output window, operand 0, single buffered']
    #allocation8 [shape = 'u8[1024]{0}', space=vmem, size = 0x400, scoped, tag = 'output window, operand 1, single buffered']
    #allocation9 [shape = 's32[1]{0}', space=sflag, size = 0x4, scoped, tag = 'scoped memory for tpu_custom_call.1']
    %10 = vsyncpa [#allocation3], 0
    %s11 = scalar_lea.sflag [#allocation3], 1
    %12 = vsyncpa %s11, 0
    %13 = vsyncpa [#allocation6], 0
    %s14 = scalar_lea.sflag [#allocation6], 1
    %15 = vsyncpa %s14, 0
    %16 = vsyncpa [#allocation4], 0
    %17 = vsyncpa [#allocation9], 0
    loop: start=0, step=1, limit=4
    $region2: #{tpu_custom_call.1} parent=1 // loop_pre_header
      _
    $region3: #{tpu_custom_call.1} parent=1 // loop_header
      %s19 = sphi 0, %s23
      %p20 = scmp.ge.s32.totalorder %s19, 4
      %s26 = sphi 0, %s45
      %s27 = sphi 0, %s41
      %s28 = sphi 0, %s37
      %s29 = sphi 0, %s26
      %s30 = sphi 0, %s27
      %s31 = sphi 0, %s28
      %s32 = sphi 0, %s29
      %s33 = sphi 0, %s30
      %s34 = sphi 0, %s31
      %s56 = sphi 0, %s58
      %s59 = sphi 0, %s56
      %s60 = sphi 0, %s59
      %s76 = sphi 0, %s60
      %s90 = sphi 0, %s92
      %s93 = sphi 0, %s90
      %s94 = sphi 0, %s93
      %s110 = sphi 0, %s94
      %s124 = sphi 0, %s126
      %s127 = sphi 0, %s124
      %s128 = sphi 0, %s127
      %s144 = sphi 0, %s128
      %s150 = sphi 0, %s152
      %s153 = sphi 0, %s150
      %s154 = sphi 0, %s153
      %s170 = sphi 0, %s154
      %s176 = sphi 0, %s178
      %s179 = sphi 0, %s176
      %s180 = sphi 0, %s179
      %s196 = sphi 0, %s180
    $region4: #{tpu_custom_call.1} parent=1 // loop_header_branch
      %22 = sbr.rel (%p20) target = $region8
    $region5: #{tpu_custom_call.1} parent=1 // loop_body
      %s24 = ssub.s32 %s19, 1
      %s25 = ssub.s32 %s19, 2
      %s35 = sadd.s32 1, %s28
      %p36 = scmp.ge.s32.totalorder %s35, 1
      %s37 = scalar_select %p36, 0, %s35
      %s38 = sadd.s32 1, %s27
      %s39 = scalar_select %p36, %s38, %s27
      %p40 = scmp.ge.s32.totalorder %s39, 2
      %s41 = scalar_select %p40, 0, %s39
      %s42 = sadd.s32 1, %s26
      %s43 = scalar_select %p40, %s42, %s26
      %p44 = scmp.ge.s32.totalorder %s43, 1
      %s45 = scalar_select %p44, 0, %s43
      %s46 = sadd.s32 %s26, %s28
      %p47 = scmp.lt.s32.totalorder %s46, 0
      %s48 = scalar_select %p47, %s46, 0
      %s49 = sadd.s32 %s45, %s37
      %p50 = scmp.lt.s32.totalorder %s49, 0
      %s51 = scalar_select %p50, %s49, 0
      %s52 = ssub.s32 %s27, %s41
      %s53 = ssub.s32 %s48, %s51
      %s54 = sor.u32 %s52, %s53
      %p55 = scmp.eq.s32.totalorder %s54, 0
      %s57 = sadd.s32 %s56, 1
      %s58 = scalar_select %p55, %s56, %s57
      %p61 = pneg %p55
      %p62 = scmp.eq.s32.totalorder %s19, 1
      %p63 = por %p61, %p62
      %p64 = scmp.ne.s32.totalorder %s56, %s59
      %p65 = scmp.eq.s32.totalorder %s19, 0
      %p66 = por %p64, %p65
      %p67 = scmp.ne.s32.totalorder %s56, %s59
      %p68 = scmp.eq.s32.totalorder %s24, 1
      %p69 = por %p67, %p68
      %p70 = scmp.ne.s32.totalorder %s59, %s60
      %p71 = scmp.eq.s32.totalorder %s24, 0
      %p72 = por %p70, %p71
      %p73 = scmp.ne.s32.totalorder %s59, %s60
      %p74 = scmp.eq.s32.totalorder %s25, 1
      %p75 = por %p73, %p74
      %p77 = scmp.ne.s32.totalorder %s60, %s76
      %p78 = scmp.eq.s32.totalorder %s25, 0
      %p79 = por %p77, %p78
      %s80 = sadd.s32 %s26, %s28
      %p81 = scmp.lt.s32.totalorder %s80, 0
      %s82 = scalar_select %p81, %s80, 0
      %s83 = sadd.s32 %s45, %s37
      %p84 = scmp.lt.s32.totalorder %s83, 0
      %s85 = scalar_select %p84, %s83, 0
      %s86 = ssub.s32 %s27, %s41
      %s87 = ssub.s32 %s82, %s85
      %s88 = sor.u32 %s86, %s87
      %p89 = scmp.eq.s32.totalorder %s88, 0
      %s91 = sadd.s32 %s90, 1
      %s92 = scalar_select %p89, %s90, %s91
      %p95 = pneg %p89
      %p96 = scmp.eq.s32.totalorder %s19, 1
      %p97 = por %p95, %p96
      %p98 = scmp.ne.s32.totalorder %s90, %s93
      %p99 = scmp.eq.s32.totalorder %s19, 0
      %p100 = por %p98, %p99
      %p101 = scmp.ne.s32.totalorder %s90, %s93
      %p102 = scmp.eq.s32.totalorder %s24, 1
      %p103 = por %p101, %p102
      %p104 = scmp.ne.s32.totalorder %s93, %s94
      %p105 = scmp.eq.s32.totalorder %s24, 0
      %p106 = por %p104, %p105
      %p107 = scmp.ne.s32.totalorder %s93, %s94
      %p108 = scmp.eq.s32.totalorder %s25, 1
      %p109 = por %p107, %p108
      %p111 = scmp.ne.s32.totalorder %s94, %s110
      %p112 = scmp.eq.s32.totalorder %s25, 0
      %p113 = por %p111, %p112
      %s114 = sadd.s32 %s26, %s28
      %p115 = scmp.lt.s32.totalorder %s114, 0
      %s116 = scalar_select %p115, %s114, 0
      %s117 = sadd.s32 %s45, %s37
      %p118 = scmp.lt.s32.totalorder %s117, 0
      %s119 = scalar_select %p118, %s117, 0
      %s120 = ssub.s32 %s27, %s41
      %s121 = ssub.s32 %s116, %s119
      %s122 = sor.u32 %s120, %s121
      %p123 = scmp.eq.s32.totalorder %s122, 0
      %s125 = sadd.s32 %s124, 1
      %s126 = scalar_select %p123, %s124, %s125
      %p129 = pneg %p123
      %p130 = scmp.eq.s32.totalorder %s19, 1
      %p131 = por %p129, %p130
      %p132 = scmp.ne.s32.totalorder %s124, %s127
      %p133 = scmp.eq.s32.totalorder %s19, 0
      %p134 = por %p132, %p133
      %p135 = scmp.ne.s32.totalorder %s124, %s127
      %p136 = scmp.eq.s32.totalorder %s24, 1
      %p137 = por %p135, %p136
      %p138 = scmp.ne.s32.totalorder %s127, %s128
      %p139 = scmp.eq.s32.totalorder %s24, 0
      %p140 = por %p138, %p139
      %p141 = scmp.ne.s32.totalorder %s127, %s128
      %p142 = scmp.eq.s32.totalorder %s25, 1
      %p143 = por %p141, %p142
      %p145 = scmp.ne.s32.totalorder %s128, %s144
      %p146 = scmp.eq.s32.totalorder %s25, 0
      %p147 = por %p145, %p146
      %s148 = ssub.s32 %s26, %s45
      %p149 = scmp.eq.s32.totalorder %s148, 0
      %s151 = sadd.s32 %s150, 1
      %s152 = scalar_select %p149, %s150, %s151
      %p155 = pneg %p149
      %p156 = scmp.eq.s32.totalorder %s19, 1
      %p157 = por %p155, %p156
      %p158 = scmp.ne.s32.totalorder %s150, %s153
      %p159 = scmp.eq.s32.totalorder %s19, 0
      %p160 = por %p158, %p159
      %p161 = scmp.ne.s32.totalorder %s150, %s153
      %p162 = scmp.eq.s32.totalorder %s24, 1
      %p163 = por %p161, %p162
      %p164 = scmp.ne.s32.totalorder %s153, %s154
      %p165 = scmp.eq.s32.totalorder %s24, 0
      %p166 = por %p164, %p165
      %p167 = scmp.ne.s32.totalorder %s153, %s154
      %p168 = scmp.eq.s32.totalorder %s25, 1
      %p169 = por %p167, %p168
      %p171 = scmp.ne.s32.totalorder %s154, %s170
      %p172 = scmp.eq.s32.totalorder %s25, 0
      %p173 = por %p171, %p172
      %s174 = ssub.s32 %s26, %s45
      %p175 = scmp.eq.s32.totalorder %s174, 0
      %s177 = sadd.s32 %s176, 1
      %s178 = scalar_select %p175, %s176, %s177
      %p181 = pneg %p175
      %p182 = scmp.eq.s32.totalorder %s19, 1
      %p183 = por %p181, %p182
      %p184 = scmp.ne.s32.totalorder %s176, %s179
      %p185 = scmp.eq.s32.totalorder %s19, 0
      %p186 = por %p184, %p185
      %p187 = scmp.ne.s32.totalorder %s176, %s179
      %p188 = scmp.eq.s32.totalorder %s24, 1
      %p189 = por %p187, %p188
      %p190 = scmp.ne.s32.totalorder %s179, %s180
      %p191 = scmp.eq.s32.totalorder %s24, 0
      %p192 = por %p190, %p191
      %p193 = scmp.ne.s32.totalorder %s179, %s180
      %p194 = scmp.eq.s32.totalorder %s25, 1
      %p195 = por %p193, %p194
      %p197 = scmp.ne.s32.totalorder %s180, %s196
      %p198 = scmp.eq.s32.totalorder %s25, 0
      %p199 = por %p197, %p198
      %p200 = scmp.le.s32.totalorder 1, %s19
      %p201 = scmp.lt.s32.totalorder %s19, 3
      %p202 = pnand %p200, %p201
      %p203 = pneg %p202
      // Predicated region
      $region9: #{tpu_custom_call.1} parent=5 // pred_check
        _
      $region10: #{tpu_custom_call.1} parent=5 // pred_check_branch
        %205 = sbr.rel (%p202) target = $region12
      $region11: #{tpu_custom_call.1} parent=5 // pred_region
        %s206 = ssub.s32 %s19, 1
      $region12: #{tpu_custom_call.1} parent=5 // pred_fallthru
        _
      %p207 = scmp.lt.s32.totalorder %s19, 2
      // Predicated region
      $region13: #{tpu_custom_call.1} parent=5 // pred_check
        %p208 = pneg %p207
      $region14: #{tpu_custom_call.1} parent=5 // pred_check_branch
        %210 = sbr.rel (%p208) target = $region16
      $region15: #{tpu_custom_call.1} parent=5 // pred_region
        // Predicated region
        $region17: #{tpu_custom_call.1} parent=15 // pred_check
          %p211 = pneg %p66
        $region18: #{tpu_custom_call.1} parent=15 // pred_check_branch
          %213 = sbr.rel (%p211) target = $region20
        $region19: #{tpu_custom_call.1} parent=15 // pred_region
          %s214 = sand.u32 %s56, 1
          %s215 = scalar_lea.sflag [#allocation3], %s214
          %s216 = sand.u32 %s56, 1
          %s217 = smul.addr %s216, 2
          %s218 = scalar_lea.vmem [#allocation2], %s217
          %s219 = sadd.s32 %s26, %s28
          %p220 = scmp.lt.s32.totalorder %s219, 0
          %s221 = scalar_select %p220, %s219, 0
          %s223 = ssub.s32 32, 32
          %224 = vsyncadd %s215, %s223
          %s225 = smul.addr %s221, 2
          %s226 = smul.addr %s27, 8
          %s227 = sadd.s32 %s225, %s226
          %s228 = smul.addr %s227, 16
          %s229 = scalar_lea.hbm %s0, %s228
          %s231 = sshll.u32 %s218, 4
          %s232 = int_to_ptr.vmem [resolvable:$true] %s231
          %234 = dma.hbm_to_vmem [thread:$0]  %s229, 32, %s232, %s215
        $region20: #{tpu_custom_call.1} parent=15 // pred_fallthru
          _
        // Predicated region
        $region21: #{tpu_custom_call.1} parent=15 // pred_check
          %p235 = pneg %p100
        $region22: #{tpu_custom_call.1} parent=15 // pred_check_branch
          %237 = sbr.rel (%p235) target = $region24
        $region23: #{tpu_custom_call.1} parent=15 // pred_region
          %s238 = sand.u32 %s90, 1
          %s239 = scalar_lea.sflag [#allocation6], %s238
          %s240 = sand.u32 %s90, 1
          %s241 = smul.addr %s240, 2
          %s242 = scalar_lea.vmem [#allocation5], %s241
          %s243 = sadd.s32 %s26, %s28
          %p244 = scmp.lt.s32.totalorder %s243, 0
          %s245 = scalar_select %p244, %s243, 0
          %s247 = ssub.s32 32, 32
          %248 = vsyncadd %s239, %s247
          %s249 = smul.addr %s245, 2
          %s250 = smul.addr %s27, 2
          %s251 = sadd.s32 %s249, %s250
          %s252 = smul.addr %s251, 16
          %s253 = scalar_lea.hbm %s1, %s252
          %s255 = sshll.u32 %s242, 4
          %s256 = int_to_ptr.vmem [resolvable:$true] %s255
          %258 = dma.hbm_to_vmem [thread:$0]  %s253, 32, %s256, %s239
        $region24: #{tpu_custom_call.1} parent=15 // pred_fallthru
          _
        // Predicated region
        $region25: #{tpu_custom_call.1} parent=15 // pred_check
          %p259 = pneg %p134
        $region26: #{tpu_custom_call.1} parent=15 // pred_check_branch
          %261 = sbr.rel (%p259) target = $region28
        $region27: #{tpu_custom_call.1} parent=15 // pred_region
          %s262 = sadd.s32 %s26, %s28
          %p263 = scmp.lt.s32.totalorder %s262, 0
          %s264 = scalar_select %p263, %s262, 0
          %p265 = scmp.lt.s32.totalorder %s27, 1
          %s266 = scalar_select %p265, %s27, 1
          %p267 = scmp.lt.s32.totalorder %s264, 0
          %s268 = scalar_select %p267, %s264, 0
          %s269 = smul.addr %s268, 2
          %s270 = smul.addr %s266, 2
          %s271 = sadd.s32 %s269, %s270
          %s272 = scalar_lea.vmem %s2, %s271
          %s273 = sadd.s32 %s26, %s28
          %p274 = scmp.lt.s32.totalorder %s273, 0
          %s275 = scalar_select %p274, %s273, 0
        $region28: #{tpu_custom_call.1} parent=15 // pred_fallthru
          _
      $region16: #{tpu_custom_call.1} parent=5 // pred_fallthru
        _
      %p276 = scmp.le.s32.totalorder 1, %s19
      %p277 = scmp.lt.s32.totalorder %s19, 3
      %p278 = pnand %p276, %p277
      %p279 = pneg %p278
      // Predicated region
      $region29: #{tpu_custom_call.1} parent=5 // pred_check
        _
      $region30: #{tpu_custom_call.1} parent=5 // pred_check_branch
        %281 = sbr.rel (%p278) target = $region32
      $region31: #{tpu_custom_call.1} parent=5 // pred_region
        %s282 = ssub.s32 %s19, 1
        %s283 = sand.u32 %s59, 1
        %s284 = scalar_lea.sflag [#allocation3], %s283
        %s285 = sand.u32 %s59, 1
        %s286 = smul.addr %s285, 2
        %s287 = scalar_lea.vmem [#allocation2], %s286
        // Predicated region
        $region33: #{tpu_custom_call.1} parent=31 // pred_check
          %p288 = pneg %p72
        $region34: #{tpu_custom_call.1} parent=31 // pred_check_branch
          %290 = sbr.rel (%p288) target = $region36
        $region35: #{tpu_custom_call.1} parent=31 // pred_region
          %291 = dma.done %s284, 32
        $region36: #{tpu_custom_call.1} parent=31 // pred_fallthru
          _
        %s292 = sand.u32 %s93, 1
        %s293 = scalar_lea.sflag [#allocation6], %s292
        %s294 = sand.u32 %s93, 1
        %s295 = smul.addr %s294, 2
        %s296 = scalar_lea.vmem [#allocation5], %s295
        // Predicated region
        $region37: #{tpu_custom_call.1} parent=31 // pred_check
          %p297 = pneg %p106
        $region38: #{tpu_custom_call.1} parent=31 // pred_check_branch
          %299 = sbr.rel (%p297) target = $region40
        $region39: #{tpu_custom_call.1} parent=31 // pred_region
          %300 = dma.done %s293, 32
        $region40: #{tpu_custom_call.1} parent=31 // pred_fallthru
          _
        %s301 = sand.u32 %s59, 1
        %s302 = scalar_lea.sflag [#allocation3], %s301
        %s303 = sand.u32 %s59, 1
        %s304 = smul.addr %s303, 2
        %s305 = scalar_lea.vmem [#allocation2], %s304
        %p306 = pneg %p72
        %p307 = pneg %p69
        %s308 = sand.u32 %s93, 1
        %s309 = scalar_lea.sflag [#allocation6], %s308
        %s310 = sand.u32 %s93, 1
        %s311 = smul.addr %s310, 2
        %s312 = scalar_lea.vmem [#allocation5], %s311
        %p313 = pneg %p106
        %p314 = pneg %p103
        %s315 = sadd.s32 %s29, %s31
        %p316 = scmp.lt.s32.totalorder %s315, 0
        %s317 = scalar_select %p316, %s315, 0
        %p318 = scmp.lt.s32.totalorder %s30, 1
        %s319 = scalar_select %p318, %s30, 1
        %p320 = scmp.lt.s32.totalorder %s317, 0
        %s321 = scalar_select %p320, %s317, 0
        %s322 = smul.addr %s321, 2
        %s323 = smul.addr %s319, 2
        %s324 = sadd.s32 %s322, %s323
        %s325 = scalar_lea.vmem %s2, %s324
        %p326 = pneg %p140
        %p327 = pneg %p137
        %p328 = pneg %p166
        %p329 = pneg %p163
        %p330 = pneg %p192
        %p331 = pneg %p189
        %s332 = sadd.s32 %s29, %s31
        %p333 = scmp.lt.s32.totalorder %s332, 0
        %s334 = scalar_select %p333, %s332, 0
        %s335 = sadd.s32 %s29, %s31
        %p336 = scmp.lt.s32.totalorder %s335, 0
        %s337 = scalar_select %p336, %s335, 0
        %s338 = sadd.s32 %s29, %s31
        %p339 = scmp.lt.s32.totalorder %s338, 0
        %s340 = scalar_select %p339, %s338, 0
        %p341 = scmp.lt.s32.totalorder %s30, 1
        %s342 = scalar_select %p341, %s30, 1
        %p343 = scmp.lt.s32.totalorder %s340, 0
        %s344 = scalar_select %p343, %s340, 0
        %s345 = smul.addr %s344, 2
        %s346 = smul.addr %s342, 2
        %s347 = sadd.s32 %s345, %s346
        %s348 = scalar_lea.vmem %s2, %s347
        %s349 = sadd.s32 %s29, %s31
        %p350 = scmp.lt.s32.totalorder %s349, 0
        %s351 = scalar_select %p350, %s349, 0
        %p352 = scmp.eq.s32.totalorder %s30, 0
        %p353 = scmp.eq.s32.totalorder %s31, 0
        %p354 = pnand %p352, %p353
        %p355 = pneg %p354
        // Predicated region
        $region41: #{tpu_custom_call.1} parent=31 // pred_check
          _
        $region42: #{tpu_custom_call.1} parent=31 // pred_check_branch
          %357 = sbr.rel (%p354) target = $region44
        $region43: #{tpu_custom_call.1} parent=31 // pred_region
          %v358 = vlaneseq
          %vm359 = vcmp.ge.s32.totalorder %v358, 0
          %vm360 = vcmp.lt.s32.totalorder %v358, 256
          %vm361 = vmand %vm359, %vm360
          %362 = vst.msk [vmem:[#allocation7] sm:$0x3] %vm361, 0.0
          %363 = vst.msk [vmem:[#allocation8] sm:$0x3] %vm361, 0.0
        $region44: #{tpu_custom_call.1} parent=31 // pred_fallthru
          _
        %v364 = vld [vmem:[%s287] sm:$0x3]
        %v365 = vld [vmem:[%s296] sm:$0x3]
        %v366 = vld [vmem:[%s348] sm:$0x3]
        %v367 = vsub.f32 %v364, %v365
        %v368 = vand.u32 2147483647, %v367
        %v369 = vmul.f32 %v368, %v366
        %v370 = vld [vmem:[#allocation7] sm:$0x3]
        %v371 = vadd.f32 %v370, %v369
        %v372 = vlaneseq
        %vm373 = vcmp.ge.s32.totalorder %v372, 0
        %vm374 = vcmp.lt.s32.totalorder %v372, 256
        %vm375 = vmand %vm373, %vm374
        %376 = vst.msk [vmem:[#allocation7] sm:$0x3] %vm375, %v371
        %v377 = vld [vmem:[#allocation8] sm:$0x3]
        %v378 = vadd.f32 %v377, %v366
        %379 = vst.msk [vmem:[#allocation8] sm:$0x3] %vm375, %v378
        // Predicated region
        $region45: #{tpu_custom_call.1} parent=31 // pred_check
          %p380 = pneg %p163
        $region46: #{tpu_custom_call.1} parent=31 // pred_check_branch
          %382 = sbr.rel (%p380) target = $region48
        $region47: #{tpu_custom_call.1} parent=31 // pred_region
          %s384 = ssub.s32 32, 32
          %385 = vsyncadd [#allocation4], %s384
          %s386 = smul.addr %s29, 2
          %s387 = smul.addr %s386, 16
          %s388 = scalar_lea.hbm %s3, %s387
          %s390 = sshll.u32 [#allocation7], 4
          %s391 = int_to_ptr.vmem [resolvable:$true] %s390
          %393 = dma.vmem_to_hbm [thread:$0]  %s391, 32, %s388, [#allocation4]
        $region48: #{tpu_custom_call.1} parent=31 // pred_fallthru
          _
        // Predicated region
        $region49: #{tpu_custom_call.1} parent=31 // pred_check
          %p394 = pneg %p189
        $region50: #{tpu_custom_call.1} parent=31 // pred_check_branch
          %396 = sbr.rel (%p394) target = $region52
        $region51: #{tpu_custom_call.1} parent=31 // pred_region
          %s398 = ssub.s32 32, 32
          %399 = vsyncadd [#allocation9], %s398
          %s400 = smul.addr %s29, 2
          %s401 = smul.addr %s400, 16
          %s402 = scalar_lea.hbm %s4, %s401
          %s404 = sshll.u32 [#allocation8], 4
          %s405 = int_to_ptr.vmem [resolvable:$true] %s404
          %407 = dma.vmem_to_hbm [thread:$0]  %s405, 32, %s402, [#allocation9]
        $region52: #{tpu_custom_call.1} parent=31 // pred_fallthru
          _
        // Predicated region
        $region53: #{tpu_custom_call.1} parent=31 // pred_check
          %p408 = pneg %p163
        $region54: #{tpu_custom_call.1} parent=31 // pred_check_branch
          %410 = sbr.rel (%p408) target = $region56
        $region55: #{tpu_custom_call.1} parent=31 // pred_region
          %411 = dma.done [#allocation4], 32
        $region56: #{tpu_custom_call.1} parent=31 // pred_fallthru
          _
        // Predicated region
        $region57: #{tpu_custom_call.1} parent=31 // pred_check
          %p412 = pneg %p189
        $region58: #{tpu_custom_call.1} parent=31 // pred_check_branch
          %414 = sbr.rel (%p412) target = $region60
        $region59: #{tpu_custom_call.1} parent=31 // pred_region
          %415 = dma.done [#allocation9], 32
        $region60: #{tpu_custom_call.1} parent=31 // pred_fallthru
          _
      $region32: #{tpu_custom_call.1} parent=5 // pred_fallthru
        _
      %p416 = scmp.le.s32.totalorder 2, %s19
      // Predicated region
      $region61: #{tpu_custom_call.1} parent=5 // pred_check
        %p417 = pneg %p416
      $region62: #{tpu_custom_call.1} parent=5 // pred_check_branch
        %419 = sbr.rel (%p417) target = $region64
      $region63: #{tpu_custom_call.1} parent=5 // pred_region
        %s420 = ssub.s32 %s19, 2
      $region64: #{tpu_custom_call.1} parent=5 // pred_fallthru
        _
    $region6: #{tpu_custom_call.1} parent=1 // loop_footer
      %s23 = sadd.s32 1, %s19
    $region7: #{tpu_custom_call.1} parent=1 // loop_footer_branch
      %18 = sbr.rel target = $region3
    $region8: #{tpu_custom_call.1} parent=1 // loop_exit
      _
    %421 = vsyncpa [#allocation3], 1
    %s422 = scalar_lea.sflag [#allocation3], 1
    %423 = vsyncpa %s422, 1
    %424 = vsyncpa [#allocation6], 1
    %s425 = scalar_lea.sflag [#allocation6], 1
    %426 = vsyncpa %s425, 1
    %427 = vsyncpa [#allocation4], 1
    %s428 = scalar_lea.sflag [#allocation4], 1
    %429 = vsyncpa %s428, 1
    %430 = vsyncpa [#allocation9], 1

</llo_original>
